<compile_context>
chip_gen: v6e
topology: v6e:2x2x1
jax: 0.10.0
libtpu: 0.0.40
codegen_flags: <defaults>
</compile_context>

<pallas_src>
import jax
import jax.numpy as jnp
from jax.experimental import pallas as pl
from jax.experimental.pallas import tpu as pltpu


def _linear_sigmoid_kernel(x_ref, w_ref, b_ref, o_ref):
    # x_ref: (B, F) VMEM   w_ref: (1, F) VMEM   b_ref: (1, 1) SMEM   o_ref: (B, 1) VMEM
    # VPU elementwise multiply (w broadcasts over the sublane/batch axis)
    # followed by an XLU lane reduction — no MXU involvement for N=1.
    z = jnp.sum(x_ref[...] * w_ref[...], axis=-1, keepdims=True)   # (B, 1) f32
    z = z + b_ref[0, 0]                                            # scalar bias from SMEM
    o_ref[...] = jax.nn.sigmoid(z).astype(o_ref.dtype)             # EUP exp/recip


def linear_regressor_forward(x, weight, bias):
    """x: [B, F] f32, weight: [1, F] f32 (PyTorch nn.Linear layout), bias: [1] f32."""
    B, F = x.shape
    w = weight.astype(jnp.float32)                  # keep lane-dense [1, F]
    b = bias.reshape(1, 1).astype(jnp.float32)      # [1, 1] scalar for SMEM

    return pl.pallas_call(
        _linear_sigmoid_kernel,
        out_shape=jax.ShapeDtypeStruct((B, 1), jnp.float32),
        in_specs=[
            pl.BlockSpec(memory_space=pltpu.MemorySpace.VMEM),   # x, whole array
            pl.BlockSpec(memory_space=pltpu.MemorySpace.VMEM),   # w, whole array
            pl.BlockSpec(memory_space=pltpu.MemorySpace.SMEM),   # bias as SMEM scalar
        ],
        out_specs=pl.BlockSpec(memory_space=pltpu.MemorySpace.VMEM),
    )(x.astype(jnp.float32), w, b)


if __name__ == "__main__":
    key = jax.random.PRNGKey(0)
    B = 8            # batch
    num_ftrs = 32    # feature dim fed into regressor1
    z_dimension = 128

    kx, kw1, kb1, kw2, kb2 = jax.random.split(key, 5)

    # Deterministic parameter init (matches nn.Linear's U(-1/sqrt(fan_in), ...)).
    bound1 = 1.0 / jnp.sqrt(num_ftrs)
    w1 = jax.random.uniform(kw1, (1, num_ftrs), jnp.float32, -bound1, bound1)
    b1 = jax.random.uniform(kb1, (1,), jnp.float32, -bound1, bound1)

    # regressor2 params exist in the module but are unused in forward().
    bound2 = 1.0 / jnp.sqrt(z_dimension)
    w2 = jax.random.uniform(kw2, (1, z_dimension), jnp.float32, -bound2, bound2)
    b2 = jax.random.uniform(kb2, (1,), jnp.float32, -bound2, bound2)

    x = jax.random.normal(kx, (B, num_ftrs), jnp.float32)

    out = linear_regressor_forward(x, w1, b1)
    jax.block_until_ready(out)

    # Sanity check against plain JAX reference.
    ref = jax.nn.sigmoid(x @ w1.T + b1)
    assert out.shape == (B, 1)
    assert jnp.allclose(out, ref, atol=1e-5, rtol=1e-5)

    print("KERNEL_OK")
</pallas_src>

<mosaic_0001>
module attributes {stable_mosaic.version = 11 : i64} {
  func.func @_linear_sigmoid_kernel(%arg0: memref<8x32xf32, #tpu.memory_space<vmem>>, %arg1: memref<1x32xf32, #tpu.memory_space<vmem>>, %arg2: memref<1x1xf32, #tpu.memory_space<smem>>, %arg3: memref<8x1xf32, #tpu.memory_space<vmem>>) attributes {dimension_semantics = [], scalar_prefetch = 0 : i64, scratch_operands = 0 : i64, tpu.core_type = #tpu.core_type<tc>} {
    %c0 = arith.constant 0 : index
    %c0_0 = arith.constant 0 : index
    %0 = vector.load %arg0[%c0, %c0_0] : memref<8x32xf32, #tpu.memory_space<vmem>>, vector<8x32xf32>
    %c0_1 = arith.constant 0 : index
    %c0_2 = arith.constant 0 : index
    %1 = vector.load %arg1[%c0_1, %c0_2] : memref<1x32xf32, #tpu.memory_space<vmem>>, vector<1x32xf32>
    %2 = vector.broadcast %1 : vector<1x32xf32> to vector<8x32xf32>
    %3 = arith.mulf %0, %2 : vector<8x32xf32>
    %cst = arith.constant dense<0.000000e+00> : vector<8xf32>
    %4 = vector.multi_reduction <add>, %3, %cst [1] : vector<8x32xf32> to vector<8xf32>
    %5 = vector.shape_cast %4 : vector<8xf32> to vector<8x1xf32>
    %c0_3 = arith.constant 0 : index
    %c0_4 = arith.constant 0 : index
    %6 = memref.load %arg2[%c0_3, %c0_4] : memref<1x1xf32, #tpu.memory_space<smem>>
    %7 = vector.broadcast %6 : f32 to vector<8x1xf32>
    %8 = arith.addf %5, %7 : vector<8x1xf32>
    %9 = arith.negf %8 : vector<8x1xf32>
    %10 = math.exp %9 : vector<8x1xf32>
    %cst_5 = arith.constant 1.000000e+00 : f32
    %11 = vector.broadcast %cst_5 : f32 to vector<8x1xf32>
    %12 = arith.addf %11, %10 : vector<8x1xf32>
    %13 = arith.divf %11, %12 : vector<8x1xf32>
    %c0_6 = arith.constant 0 : index
    %c0_7 = arith.constant 0 : index
    %14 = vector.load %arg3[%c0_6, %c0_7] : memref<8x1xf32, #tpu.memory_space<vmem>>, vector<8x1xf32>
    tpu.vector_store %arg3[%c0_6, %c0_7], %13 {strides = array<i32>} : memref<8x1xf32, #tpu.memory_space<vmem>>, vector<8x1xf32>,
    return
  }
}

</mosaic_0001>

<llo_original>
// kernel: tpu_custom_call.1
$region0: #{tpu_custom_call.1}
  #allocation0 [shape = 'u32[]', space=smem, size = 0x4, offset = 0x4, fixed_abs, tag = 'smem constant byte address 0x4 - core index']
  #allocation1 [shape = 'u32[144,128]{1,0:T(1,128)}', space=vmem, size = 0x12000, scoped, tag = 'internal scratch']
  #allocation2 [shape = 'f32[1,1]{1,0:T(1,128)S(6)}', space=smem, size = 0x200, scoped, tag = 'scoped memory for tpu_custom_call.1']
  %s0 = inlined_call_operand.hbm [shape: f32[8,32], index: 0, kind: input, shape index: {}]
  %s1 = inlined_call_operand.vmem [shape: f32[1,32], index: 1, kind: input, shape index: {}]
  %s2 = inlined_call_operand.<no memory space> [shape: f32[1,1], index: 2, kind: input, shape index: {}]
  %s3 = inlined_call_operand.vmem [shape: f32[8,1], index: 3, kind: output, shape index: {}]
  %s4 = sld [smem:[#allocation0]]
  $region26: #{tpu_custom_call.1} parent=0
    _
  %s6 = ssub.s32 1, %s4
  %s7 = scalar_select 0, %s6, %s4
  %8 = sst [smem:[#allocation2]] %s2
  $region1: #{tpu_custom_call.1} parent=0
    #allocation3 [shape = 'u8[4096]{0}', space=vmem, size = 0x1000, scoped, tag = 'input window, operand 0, single buffered']
    #allocation4 [shape = 's32[1]{0}', space=sflag, size = 0x4, scoped, tag = 'scoped memory for tpu_custom_call.1']
    %9 = vsyncpa [#allocation4], 0
    // Predicated region
    $region2: #{tpu_custom_call.1} parent=1 // pred_check
      _
    $region3: #{tpu_custom_call.1} parent=1 // pred_check_branch
      %11 = sbr.rel (0) target = $region5
    $region4: #{tpu_custom_call.1} parent=1 // pred_region
      %s13 = ssub.s32 128, 128
      %14 = vsyncadd [#allocation4], %s13
      %s16 = sshll.u32 [#allocation3], 4
      %s17 = int_to_ptr.vmem [resolvable:$true] %s16
      %19 = dma.hbm_to_vmem [thread:$0]  %s0, 128, %s17, [#allocation4]
    $region5: #{tpu_custom_call.1} parent=1 // pred_fallthru
      _
    // Predicated region
    $region6: #{tpu_custom_call.1} parent=1 // pred_check
      _
    $region7: #{tpu_custom_call.1} parent=1 // pred_check_branch
      %21 = sbr.rel (0) target = $region9
    $region8: #{tpu_custom_call.1} parent=1 // pred_region
      _
    $region9: #{tpu_custom_call.1} parent=1 // pred_fallthru
      _
    // Predicated region
    $region10: #{tpu_custom_call.1} parent=1 // pred_check
      _
    $region11: #{tpu_custom_call.1} parent=1 // pred_check_branch
      %23 = sbr.rel (0) target = $region13
    $region12: #{tpu_custom_call.1} parent=1 // pred_region
      _
    $region13: #{tpu_custom_call.1} parent=1 // pred_fallthru
      _
    // Predicated region
    $region14: #{tpu_custom_call.1} parent=1 // pred_check
      _
    $region15: #{tpu_custom_call.1} parent=1 // pred_check_branch
      %25 = sbr.rel (0) target = $region17
    $region16: #{tpu_custom_call.1} parent=1 // pred_region
      %26 = dma.done [#allocation4], 128
    $region17: #{tpu_custom_call.1} parent=1 // pred_fallthru
      _
    %v27 = vld [vmem:[#allocation3] sm:$0xff]
    %v28 = vld [vmem:[%s1] sm:$0x1]
    %v30 = vlaneseq
    %v31 = vshrl.u32 %v30, 7
    %v32 = vsub.s32 0, %v31
    %v33 = vrot.slane %v28, %v32
    %v35 = vmul.f32 %v27, %v33
    %vm36 = vcmask 261120
    %v37 = vsel %vm36, %v35, 0.0
    %38 = vadd.xlane.f32.xlu0 %v37
    %v39 = vpop.xlane.xlu0 %38
    %s40 = sld [smem:[#allocation2]]
    %v41 = vstv %s40
    %v42 = vadd.f32 %v39, %v41
    %v43 = vxor.u32 %v42, 2147483648
    %v44 = vmul.f32 %v43, 1.442695
    %v45 = vpow.pop %v44
    %v46 = vadd.f32 %v45, 1.0
    %v47 = vrcp.pop %v46
    %v48 = vmul.f32 1.0, %v47
    %vm49 = vcmask 7168
    %50 = vst.msk [vmem:[%s3] sm:$0xff] %vm49, %v48
    // Predicated region
    $region18: #{tpu_custom_call.1} parent=1 // pred_check
      _
    $region19: #{tpu_custom_call.1} parent=1 // pred_check_branch
      %52 = sbr.rel (0) target = $region21
    $region20: #{tpu_custom_call.1} parent=1 // pred_region
      _
    $region21: #{tpu_custom_call.1} parent=1 // pred_fallthru
      _
    // Predicated region
    $region22: #{tpu_custom_call.1} parent=1 // pred_check
      _
    $region23: #{tpu_custom_call.1} parent=1 // pred_check_branch
      %54 = sbr.rel (0) target = $region25
    $region24: #{tpu_custom_call.1} parent=1 // pred_region
      _
    $region25: #{tpu_custom_call.1} parent=1 // pred_fallthru
      _
    %55 = vsyncpa [#allocation4], 1

</llo_original>
